<compile_context>
chip_gen: v7x
topology: tpu7x:2x2x1
jax: 0.10.0
libtpu: 0.0.40
codegen_flags: <defaults>
</compile_context>

<pallas_src>
import jax
import jax.numpy as jnp
from jax.experimental import pallas as pl
from jax.experimental.pallas import tpu as pltpu

BN_EPS = 1e-5  # PyTorch BatchNorm1d default eps


def _bn_relu(x):
    """Training-mode BatchNorm1d over the node axis (gamma=1, beta=0) + ReLU.

    One-pass statistics: var = E[x^2] - E[x]^2 (biased, as PyTorch normalizes).
    """
    mean = jnp.mean(x, axis=0, keepdims=True)
    var = jnp.mean(x * x, axis=0, keepdims=True) - mean * mean
    var = jnp.maximum(var, 0.0)  # guard tiny negative from cancellation
    xn = (x - mean) * jax.lax.rsqrt(var + BN_EPS)
    return jnp.maximum(xn, 0.0)


def gin_forward_kernel(
    a_ref, h_ref,
    w1a_ref, b1a_ref, w2a_ref, b2a_ref,      # GIN layer 0 MLP params
    w1b_ref, b1b_ref, w2b_ref, b2b_ref,      # GIN layer 1 MLP params
    wp0_ref, bp0_ref, wp1_ref, bp1_ref, wp2_ref, bp2_ref,   # prediction heads
    score_ref,
):
    """Fused GIN forward: 2 GIN conv layers + 3 sum-pool prediction heads."""
    a = a_ref[...]                      # (N, N) bf16 0/1 adjacency, A[dst, src]
    h0 = h_ref[...]                     # (N, D_in) f32 node features

    def gin_layer(h, w1_ref, b1_ref, w2_ref, b2_ref):
        # 'sum' neighbor aggregation on the MXU in bf16 (exact for 0/1 A),
        # accumulated in f32.
        neigh = jnp.dot(a, h.astype(jnp.bfloat16),
                        preferred_element_type=jnp.float32)          # (N, Din)
        # (1 + eps) * h + neigh  with eps = 0 (learn_eps=False, init_eps=0)
        x = h + neigh
        # MLP layer 1: Linear -> BN -> ReLU
        y = jnp.dot(x, w1_ref[...], preferred_element_type=jnp.float32) + b1_ref[...]
        y = _bn_relu(y)
        # MLP layer 2 (linear output)
        z = jnp.dot(y, w2_ref[...], preferred_element_type=jnp.float32) + b2_ref[...]
        # ApplyNodeFunc: BN + ReLU
        z = _bn_relu(z)
        # GIN outer batch_norms[i] + ReLU
        z = _bn_relu(z)
        return z

    def pool_score(h, wpT_ref, bpT_ref):
        # SumPooling over nodes followed by the prediction Linear, done on the
        # VPU/XLU (broadcast multiply + lane reduce) instead of a 1-row matmul.
        pooled = jnp.sum(h, axis=0, keepdims=True)                   # (1, D)
        # wpT: (OUT, D) [PyTorch nn.Linear layout], bpT: (OUT, 1)
        return jnp.sum(pooled * wpT_ref[...], axis=1, keepdims=True) + bpT_ref[...]

    h1 = gin_layer(h0, w1a_ref, b1a_ref, w2a_ref, b2a_ref)           # (N, HID)
    h2 = gin_layer(h1, w1b_ref, b1b_ref, w2b_ref, b2b_ref)           # (N, HID)

    score = (pool_score(h0, wp0_ref, bp0_ref)
             + pool_score(h1, wp1_ref, bp1_ref)
             + pool_score(h2, wp2_ref, bp2_ref))                     # (OUT, 1)
    score_ref[...] = score


def _vmem_specs(n):
    return [pl.BlockSpec(memory_space=pltpu.MemorySpace.VMEM) for _ in range(n)]


def gin_forward(a_bf16, h0, layer_params, pred_params, out_dim):
    """layer_params: [(w1[in,hid], b1[1,hid], w2[hid,hid], b2[1,hid])] * 2
    pred_params:  [(wpT[out,in], bpT[out,1])] * 3
    Returns score of shape (1, out_dim)."""
    flat_args = [a_bf16, h0]
    for p in layer_params:
        flat_args.extend(p)
    for p in pred_params:
        flat_args.extend(p)

    score_t = pl.pallas_call(
        gin_forward_kernel,
        out_shape=jax.ShapeDtypeStruct((out_dim, 1), jnp.float32),
        in_specs=_vmem_specs(len(flat_args)),
        out_specs=pl.BlockSpec(memory_space=pltpu.MemorySpace.VMEM),
    )(*flat_args)
    return score_t.T                                                  # (1, out_dim)


def orthogonal_weight(key, out_dim, in_dim):
    """torch.nn.init.orthogonal_ on a [out_dim, in_dim] matrix (PyTorch layout)."""
    a = jax.random.normal(key, (out_dim, in_dim), jnp.float32)
    if out_dim < in_dim:
        q, r = jnp.linalg.qr(a.T)
        w = (q * jnp.sign(jnp.diag(r))).T        # [out, in]
    else:
        q, r = jnp.linalg.qr(a)
        w = q * jnp.sign(jnp.diag(r))            # [out, in]
    return w


def uniform_bias(key, fan_in, shape):
    bound = 1.0 / jnp.sqrt(jnp.float32(fan_in))
    return jax.random.uniform(key, shape, jnp.float32, -bound, bound)


if __name__ == "__main__":
    N, IN_DIM, HID, OUT_DIM = 16, 8, 32, 1
    NUM_LAYERS = 3        # -> 2 GIN conv layers, 3 hidden representations
    # NUM_MLP_LAYERS = 2  (Linear -> BN -> ReLU -> Linear), baked into the kernel

    key = jax.random.PRNGKey(0)

    # Deterministic random directed graph: A[dst, src] = 1, no self loops.
    key, k = jax.random.split(key)
    A = (jax.random.uniform(k, (N, N)) < 0.3).astype(jnp.float32)
    A = A * (1.0 - jnp.eye(N, dtype=jnp.float32))
    A_bf16 = A.astype(jnp.bfloat16)   # 0/1 mask -> exact in bf16

    key, k = jax.random.split(key)
    h0 = jax.random.normal(k, (N, IN_DIM), jnp.float32)

    # GIN layer parameters (orthogonal init for Linear weights, as init='orthogonal').
    # MLP weights stored pre-transposed [in, out] so the kernel right-multiplies.
    layer_params = []
    in_d = IN_DIM
    for _ in range(NUM_LAYERS - 1):
        key, k1, k2, kb1, kb2 = jax.random.split(key, 5)
        w1 = orthogonal_weight(k1, HID, in_d).T        # [in_d, HID]
        w2 = orthogonal_weight(k2, HID, HID).T         # [HID, HID]
        b1 = uniform_bias(kb1, in_d, (1, HID))
        b2 = uniform_bias(kb2, HID, (1, HID))
        layer_params.append((w1, b1, w2, b2))
        in_d = HID

    # Prediction heads (one per hidden representation), kept in PyTorch [out, in]
    # layout so the kernel can do a VPU multiply + lane-reduce instead of a matmul.
    pred_params = []
    in_d = IN_DIM
    for _ in range(NUM_LAYERS):
        key, kw, kb = jax.random.split(key, 3)
        wpT = orthogonal_weight(kw, OUT_DIM, in_d)     # [OUT_DIM, in_d]
        bpT = uniform_bias(kb, in_d, (OUT_DIM, 1))
        pred_params.append((wpT, bpT))
        in_d = HID

    score = gin_forward(A_bf16, h0, layer_params, pred_params, OUT_DIM)
    jax.block_until_ready(score)
    print("KERNEL_OK")
</pallas_src>

<mosaic_0001>
module attributes {stable_mosaic.version = 11 : i64} {
  func.func @gin_forward_kernel(%arg0: memref<16x16xbf16, #tpu.memory_space<vmem>>, %arg1: memref<16x8xf32, #tpu.memory_space<vmem>>, %arg2: memref<8x32xf32, #tpu.memory_space<vmem>>, %arg3: memref<1x32xf32, #tpu.memory_space<vmem>>, %arg4: memref<32x32xf32, #tpu.memory_space<vmem>>, %arg5: memref<1x32xf32, #tpu.memory_space<vmem>>, %arg6: memref<32x32xf32, #tpu.memory_space<vmem>>, %arg7: memref<1x32xf32, #tpu.memory_space<vmem>>, %arg8: memref<32x32xf32, #tpu.memory_space<vmem>>, %arg9: memref<1x32xf32, #tpu.memory_space<vmem>>, %arg10: memref<1x8xf32, #tpu.memory_space<vmem>>, %arg11: memref<1x1xf32, #tpu.memory_space<vmem>>, %arg12: memref<1x32xf32, #tpu.memory_space<vmem>>, %arg13: memref<1x1xf32, #tpu.memory_space<vmem>>, %arg14: memref<1x32xf32, #tpu.memory_space<vmem>>, %arg15: memref<1x1xf32, #tpu.memory_space<vmem>>, %arg16: memref<1x1xf32, #tpu.memory_space<vmem>>) attributes {dimension_semantics = [], scalar_prefetch = 0 : i64, scratch_operands = 0 : i64, tpu.core_type = #tpu.core_type<tc>} {
    %c0 = arith.constant 0 : index
    %c0_0 = arith.constant 0 : index
    %0 = vector.load %arg0[%c0, %c0_0] : memref<16x16xbf16, #tpu.memory_space<vmem>>, vector<16x16xbf16>
    %c0_1 = arith.constant 0 : index
    %c0_2 = arith.constant 0 : index
    %1 = vector.load %arg1[%c0_1, %c0_2] : memref<16x8xf32, #tpu.memory_space<vmem>>, vector<16x8xf32>
    %2 = arith.truncf %1 : vector<16x8xf32> to vector<16x8xbf16>
    %cst = arith.constant dense<0.000000e+00> : vector<16x8xf32>
    %3 = tpu.matmul %0, %2, %cst {dimension_numbers = #tpu.dot_dimension_numbers<[1], [0], [0], [1], [0, 0, 1, 1], [], []>} : vector<16x16xbf16>, vector<16x8xbf16>, vector<16x8xf32> -> vector<16x8xf32>
    %4 = arith.addf %1, %3 : vector<16x8xf32>
    %c0_3 = arith.constant 0 : index
    %c0_4 = arith.constant 0 : index
    %5 = vector.load %arg2[%c0_3, %c0_4] : memref<8x32xf32, #tpu.memory_space<vmem>>, vector<8x32xf32>
    %cst_5 = arith.constant dense<0.000000e+00> : vector<16x32xf32>
    %6 = tpu.matmul %4, %5, %cst_5 {dimension_numbers = #tpu.dot_dimension_numbers<[1], [0], [0], [1], [0, 0, 1, 1], [], []>} : vector<16x8xf32>, vector<8x32xf32>, vector<16x32xf32> -> vector<16x32xf32>
    %c0_6 = arith.constant 0 : index
    %c0_7 = arith.constant 0 : index
    %7 = vector.load %arg3[%c0_6, %c0_7] : memref<1x32xf32, #tpu.memory_space<vmem>>, vector<1x32xf32>
    %8 = vector.broadcast %7 : vector<1x32xf32> to vector<16x32xf32>
    %9 = arith.addf %6, %8 : vector<16x32xf32>
    %cst_8 = arith.constant dense<0.000000e+00> : vector<32xf32>
    %10 = vector.multi_reduction <add>, %9, %cst_8 [0] : vector<16x32xf32> to vector<32xf32>
    %11 = vector.shape_cast %10 : vector<32xf32> to vector<1x32xf32>
    %cst_9 = arith.constant 1.600000e+01 : f32
    %12 = vector.broadcast %cst_9 : f32 to vector<1x32xf32>
    %13 = arith.divf %11, %12 : vector<1x32xf32>
    %14 = arith.mulf %9, %9 : vector<16x32xf32>
    %cst_10 = arith.constant dense<0.000000e+00> : vector<32xf32>
    %15 = vector.multi_reduction <add>, %14, %cst_10 [0] : vector<16x32xf32> to vector<32xf32>
    %16 = vector.shape_cast %15 : vector<32xf32> to vector<1x32xf32>
    %cst_11 = arith.constant 1.600000e+01 : f32
    %17 = vector.broadcast %cst_11 : f32 to vector<1x32xf32>
    %18 = arith.divf %16, %17 : vector<1x32xf32>
    %19 = arith.mulf %13, %13 : vector<1x32xf32>
    %20 = arith.subf %18, %19 : vector<1x32xf32>
    %cst_12 = arith.constant 0.000000e+00 : f32
    %21 = vector.broadcast %cst_12 : f32 to vector<1x32xf32>
    %22 = arith.maximumf %20, %21 : vector<1x32xf32>
    %23 = vector.broadcast %13 : vector<1x32xf32> to vector<16x32xf32>
    %24 = arith.subf %9, %23 : vector<16x32xf32>
    %cst_13 = arith.constant 9.99999974E-6 : f32
    %25 = vector.broadcast %cst_13 : f32 to vector<1x32xf32>
    %26 = arith.addf %22, %25 : vector<1x32xf32>
    %27 = math.rsqrt %26 : vector<1x32xf32>
    %28 = vector.broadcast %27 : vector<1x32xf32> to vector<16x32xf32>
    %29 = arith.mulf %24, %28 : vector<16x32xf32>
    %cst_14 = arith.constant 0.000000e+00 : f32
    %30 = vector.broadcast %cst_14 : f32 to vector<16x32xf32>
    %31 = arith.maximumf %29, %30 : vector<16x32xf32>
    %c0_15 = arith.constant 0 : index
    %c0_16 = arith.constant 0 : index
    %32 = vector.load %arg4[%c0_15, %c0_16] : memref<32x32xf32, #tpu.memory_space<vmem>>, vector<32x32xf32>
    %cst_17 = arith.constant dense<0.000000e+00> : vector<16x32xf32>
    %33 = tpu.matmul %31, %32, %cst_17 {dimension_numbers = #tpu.dot_dimension_numbers<[1], [0], [0], [1], [0, 0, 1, 1], [], []>} : vector<16x32xf32>, vector<32x32xf32>, vector<16x32xf32> -> vector<16x32xf32>
    %c0_18 = arith.constant 0 : index
    %c0_19 = arith.constant 0 : index
    %34 = vector.load %arg5[%c0_18, %c0_19] : memref<1x32xf32, #tpu.memory_space<vmem>>, vector<1x32xf32>
    %35 = vector.broadcast %34 : vector<1x32xf32> to vector<16x32xf32>
    %36 = arith.addf %33, %35 : vector<16x32xf32>
    %cst_20 = arith.constant dense<0.000000e+00> : vector<32xf32>
    %37 = vector.multi_reduction <add>, %36, %cst_20 [0] : vector<16x32xf32> to vector<32xf32>
    %38 = vector.shape_cast %37 : vector<32xf32> to vector<1x32xf32>
    %cst_21 = arith.constant 1.600000e+01 : f32
    %39 = vector.broadcast %cst_21 : f32 to vector<1x32xf32>
    %40 = arith.divf %38, %39 : vector<1x32xf32>
    %41 = arith.mulf %36, %36 : vector<16x32xf32>
    %cst_22 = arith.constant dense<0.000000e+00> : vector<32xf32>
    %42 = vector.multi_reduction <add>, %41, %cst_22 [0] : vector<16x32xf32> to vector<32xf32>
    %43 = vector.shape_cast %42 : vector<32xf32> to vector<1x32xf32>
    %cst_23 = arith.constant 1.600000e+01 : f32
    %44 = vector.broadcast %cst_23 : f32 to vector<1x32xf32>
    %45 = arith.divf %43, %44 : vector<1x32xf32>
    %46 = arith.mulf %40, %40 : vector<1x32xf32>
    %47 = arith.subf %45, %46 : vector<1x32xf32>
    %cst_24 = arith.constant 0.000000e+00 : f32
    %48 = vector.broadcast %cst_24 : f32 to vector<1x32xf32>
    %49 = arith.maximumf %47, %48 : vector<1x32xf32>
    %50 = vector.broadcast %40 : vector<1x32xf32> to vector<16x32xf32>
    %51 = arith.subf %36, %50 : vector<16x32xf32>
    %cst_25 = arith.constant 9.99999974E-6 : f32
    %52 = vector.broadcast %cst_25 : f32 to vector<1x32xf32>
    %53 = arith.addf %49, %52 : vector<1x32xf32>
    %54 = math.rsqrt %53 : vector<1x32xf32>
    %55 = vector.broadcast %54 : vector<1x32xf32> to vector<16x32xf32>
    %56 = arith.mulf %51, %55 : vector<16x32xf32>
    %cst_26 = arith.constant 0.000000e+00 : f32
    %57 = vector.broadcast %cst_26 : f32 to vector<16x32xf32>
    %58 = arith.maximumf %56, %57 : vector<16x32xf32>
    %cst_27 = arith.constant dense<0.000000e+00> : vector<32xf32>
    %59 = vector.multi_reduction <add>, %58, %cst_27 [0] : vector<16x32xf32> to vector<32xf32>
    %60 = vector.shape_cast %59 : vector<32xf32> to vector<1x32xf32>
    %cst_28 = arith.constant 1.600000e+01 : f32
    %61 = vector.broadcast %cst_28 : f32 to vector<1x32xf32>
    %62 = arith.divf %60, %61 : vector<1x32xf32>
    %63 = arith.mulf %58, %58 : vector<16x32xf32>
    %cst_29 = arith.constant dense<0.000000e+00> : vector<32xf32>
    %64 = vector.multi_reduction <add>, %63, %cst_29 [0] : vector<16x32xf32> to vector<32xf32>
    %65 = vector.shape_cast %64 : vector<32xf32> to vector<1x32xf32>
    %cst_30 = arith.constant 1.600000e+01 : f32
    %66 = vector.broadcast %cst_30 : f32 to vector<1x32xf32>
    %67 = arith.divf %65, %66 : vector<1x32xf32>
    %68 = arith.mulf %62, %62 : vector<1x32xf32>
    %69 = arith.subf %67, %68 : vector<1x32xf32>
    %cst_31 = arith.constant 0.000000e+00 : f32
    %70 = vector.broadcast %cst_31 : f32 to vector<1x32xf32>
    %71 = arith.maximumf %69, %70 : vector<1x32xf32>
    %72 = vector.broadcast %62 : vector<1x32xf32> to vector<16x32xf32>
    %73 = arith.subf %58, %72 : vector<16x32xf32>
    %cst_32 = arith.constant 9.99999974E-6 : f32
    %74 = vector.broadcast %cst_32 : f32 to vector<1x32xf32>
    %75 = arith.addf %71, %74 : vector<1x32xf32>
    %76 = math.rsqrt %75 : vector<1x32xf32>
    %77 = vector.broadcast %76 : vector<1x32xf32> to vector<16x32xf32>
    %78 = arith.mulf %73, %77 : vector<16x32xf32>
    %cst_33 = arith.constant 0.000000e+00 : f32
    %79 = vector.broadcast %cst_33 : f32 to vector<16x32xf32>
    %80 = arith.maximumf %78, %79 : vector<16x32xf32>
    %81 = arith.truncf %80 : vector<16x32xf32> to vector<16x32xbf16>
    %cst_34 = arith.constant dense<0.000000e+00> : vector<16x32xf32>
    %82 = tpu.matmul %0, %81, %cst_34 {dimension_numbers = #tpu.dot_dimension_numbers<[1], [0], [0], [1], [0, 0, 1, 1], [], []>} : vector<16x16xbf16>, vector<16x32xbf16>, vector<16x32xf32> -> vector<16x32xf32>
    %83 = arith.addf %80, %82 : vector<16x32xf32>
    %c0_35 = arith.constant 0 : index
    %c0_36 = arith.constant 0 : index
    %84 = vector.load %arg6[%c0_35, %c0_36] : memref<32x32xf32, #tpu.memory_space<vmem>>, vector<32x32xf32>
    %cst_37 = arith.constant dense<0.000000e+00> : vector<16x32xf32>
    %85 = tpu.matmul %83, %84, %cst_37 {dimension_numbers = #tpu.dot_dimension_numbers<[1], [0], [0], [1], [0, 0, 1, 1], [], []>} : vector<16x32xf32>, vector<32x32xf32>, vector<16x32xf32> -> vector<16x32xf32>
    %c0_38 = arith.constant 0 : index
    %c0_39 = arith.constant 0 : index
    %86 = vector.load %arg7[%c0_38, %c0_39] : memref<1x32xf32, #tpu.memory_space<vmem>>, vector<1x32xf32>
    %87 = vector.broadcast %86 : vector<1x32xf32> to vector<16x32xf32>
    %88 = arith.addf %85, %87 : vector<16x32xf32>
    %cst_40 = arith.constant dense<0.000000e+00> : vector<32xf32>
    %89 = vector.multi_reduction <add>, %88, %cst_40 [0] : vector<16x32xf32> to vector<32xf32>
    %90 = vector.shape_cast %89 : vector<32xf32> to vector<1x32xf32>
    %cst_41 = arith.constant 1.600000e+01 : f32
    %91 = vector.broadcast %cst_41 : f32 to vector<1x32xf32>
    %92 = arith.divf %90, %91 : vector<1x32xf32>
    %93 = arith.mulf %88, %88 : vector<16x32xf32>
    %cst_42 = arith.constant dense<0.000000e+00> : vector<32xf32>
    %94 = vector.multi_reduction <add>, %93, %cst_42 [0] : vector<16x32xf32> to vector<32xf32>
    %95 = vector.shape_cast %94 : vector<32xf32> to vector<1x32xf32>
    %cst_43 = arith.constant 1.600000e+01 : f32
    %96 = vector.broadcast %cst_43 : f32 to vector<1x32xf32>
    %97 = arith.divf %95, %96 : vector<1x32xf32>
    %98 = arith.mulf %92, %92 : vector<1x32xf32>
    %99 = arith.subf %97, %98 : vector<1x32xf32>
    %cst_44 = arith.constant 0.000000e+00 : f32
    %100 = vector.broadcast %cst_44 : f32 to vector<1x32xf32>
    %101 = arith.maximumf %99, %100 : vector<1x32xf32>
    %102 = vector.broadcast %92 : vector<1x32xf32> to vector<16x32xf32>
    %103 = arith.subf %88, %102 : vector<16x32xf32>
    %cst_45 = arith.constant 9.99999974E-6 : f32
    %104 = vector.broadcast %cst_45 : f32 to vector<1x32xf32>
    %105 = arith.addf %101, %104 : vector<1x32xf32>
    %106 = math.rsqrt %105 : vector<1x32xf32>
    %107 = vector.broadcast %106 : vector<1x32xf32> to vector<16x32xf32>
    %108 = arith.mulf %103, %107 : vector<16x32xf32>
    %cst_46 = arith.constant 0.000000e+00 : f32
    %109 = vector.broadcast %cst_46 : f32 to vector<16x32xf32>
    %110 = arith.maximumf %108, %109 : vector<16x32xf32>
    %c0_47 = arith.constant 0 : index
    %c0_48 = arith.constant 0 : index
    %111 = vector.load %arg8[%c0_47, %c0_48] : memref<32x32xf32, #tpu.memory_space<vmem>>, vector<32x32xf32>
    %cst_49 = arith.constant dense<0.000000e+00> : vector<16x32xf32>
    %112 = tpu.matmul %110, %111, %cst_49 {dimension_numbers = #tpu.dot_dimension_numbers<[1], [0], [0], [1], [0, 0, 1, 1], [], []>} : vector<16x32xf32>, vector<32x32xf32>, vector<16x32xf32> -> vector<16x32xf32>
    %c0_50 = arith.constant 0 : index
    %c0_51 = arith.constant 0 : index
    %113 = vector.load %arg9[%c0_50, %c0_51] : memref<1x32xf32, #tpu.memory_space<vmem>>, vector<1x32xf32>
    %114 = vector.broadcast %113 : vector<1x32xf32> to vector<16x32xf32>
    %115 = arith.addf %112, %114 : vector<16x32xf32>
    %cst_52 = arith.constant dense<0.000000e+00> : vector<32xf32>
    %116 = vector.multi_reduction <add>, %115, %cst_52 [0] : vector<16x32xf32> to vector<32xf32>
    %117 = vector.shape_cast %116 : vector<32xf32> to vector<1x32xf32>
    %cst_53 = arith.constant 1.600000e+01 : f32
    %118 = vector.broadcast %cst_53 : f32 to vector<1x32xf32>
    %119 = arith.divf %117, %118 : vector<1x32xf32>
    %120 = arith.mulf %115, %115 : vector<16x32xf32>
    %cst_54 = arith.constant dense<0.000000e+00> : vector<32xf32>
    %121 = vector.multi_reduction <add>, %120, %cst_54 [0] : vector<16x32xf32> to vector<32xf32>
    %122 = vector.shape_cast %121 : vector<32xf32> to vector<1x32xf32>
    %cst_55 = arith.constant 1.600000e+01 : f32
    %123 = vector.broadcast %cst_55 : f32 to vector<1x32xf32>
    %124 = arith.divf %122, %123 : vector<1x32xf32>
    %125 = arith.mulf %119, %119 : vector<1x32xf32>
    %126 = arith.subf %124, %125 : vector<1x32xf32>
    %cst_56 = arith.constant 0.000000e+00 : f32
    %127 = vector.broadcast %cst_56 : f32 to vector<1x32xf32>
    %128 = arith.maximumf %126, %127 : vector<1x32xf32>
    %129 = vector.broadcast %119 : vector<1x32xf32> to vector<16x32xf32>
    %130 = arith.subf %115, %129 : vector<16x32xf32>
    %cst_57 = arith.constant 9.99999974E-6 : f32
    %131 = vector.broadcast %cst_57 : f32 to vector<1x32xf32>
    %132 = arith.addf %128, %131 : vector<1x32xf32>
    %133 = math.rsqrt %132 : vector<1x32xf32>
    %134 = vector.broadcast %133 : vector<1x32xf32> to vector<16x32xf32>
    %135 = arith.mulf %130, %134 : vector<16x32xf32>
    %cst_58 = arith.constant 0.000000e+00 : f32
    %136 = vector.broadcast %cst_58 : f32 to vector<16x32xf32>
    %137 = arith.maximumf %135, %136 : vector<16x32xf32>
    %cst_59 = arith.constant dense<0.000000e+00> : vector<32xf32>
    %138 = vector.multi_reduction <add>, %137, %cst_59 [0] : vector<16x32xf32> to vector<32xf32>
    %139 = vector.shape_cast %138 : vector<32xf32> to vector<1x32xf32>
    %cst_60 = arith.constant 1.600000e+01 : f32
    %140 = vector.broadcast %cst_60 : f32 to vector<1x32xf32>
    %141 = arith.divf %139, %140 : vector<1x32xf32>
    %142 = arith.mulf %137, %137 : vector<16x32xf32>
    %cst_61 = arith.constant dense<0.000000e+00> : vector<32xf32>
    %143 = vector.multi_reduction <add>, %142, %cst_61 [0] : vector<16x32xf32> to vector<32xf32>
    %144 = vector.shape_cast %143 : vector<32xf32> to vector<1x32xf32>
    %cst_62 = arith.constant 1.600000e+01 : f32
    %145 = vector.broadcast %cst_62 : f32 to vector<1x32xf32>
    %146 = arith.divf %144, %145 : vector<1x32xf32>
    %147 = arith.mulf %141, %141 : vector<1x32xf32>
    %148 = arith.subf %146, %147 : vector<1x32xf32>
    %cst_63 = arith.constant 0.000000e+00 : f32
    %149 = vector.broadcast %cst_63 : f32 to vector<1x32xf32>
    %150 = arith.maximumf %148, %149 : vector<1x32xf32>
    %151 = vector.broadcast %141 : vector<1x32xf32> to vector<16x32xf32>
    %152 = arith.subf %137, %151 : vector<16x32xf32>
    %cst_64 = arith.constant 9.99999974E-6 : f32
    %153 = vector.broadcast %cst_64 : f32 to vector<1x32xf32>
    %154 = arith.addf %150, %153 : vector<1x32xf32>
    %155 = math.rsqrt %154 : vector<1x32xf32>
    %156 = vector.broadcast %155 : vector<1x32xf32> to vector<16x32xf32>
    %157 = arith.mulf %152, %156 : vector<16x32xf32>
    %cst_65 = arith.constant 0.000000e+00 : f32
    %158 = vector.broadcast %cst_65 : f32 to vector<16x32xf32>
    %159 = arith.maximumf %157, %158 : vector<16x32xf32>
    %cst_66 = arith.constant dense<0.000000e+00> : vector<8xf32>
    %160 = vector.multi_reduction <add>, %1, %cst_66 [0] : vector<16x8xf32> to vector<8xf32>
    %161 = vector.shape_cast %160 : vector<8xf32> to vector<1x8xf32>
    %c0_67 = arith.constant 0 : index
    %c0_68 = arith.constant 0 : index
    %162 = vector.load %arg10[%c0_67, %c0_68] : memref<1x8xf32, #tpu.memory_space<vmem>>, vector<1x8xf32>
    %163 = arith.mulf %161, %162 : vector<1x8xf32>
    %cst_69 = arith.constant dense<0.000000e+00> : vector<1xf32>
    %164 = vector.multi_reduction <add>, %163, %cst_69 [1] : vector<1x8xf32> to vector<1xf32>
    %165 = vector.shape_cast %164 : vector<1xf32> to vector<1x1xf32>
    %c0_70 = arith.constant 0 : index
    %c0_71 = arith.constant 0 : index
    %166 = vector.load %arg11[%c0_70, %c0_71] : memref<1x1xf32, #tpu.memory_space<vmem>>, vector<1x1xf32>
    %167 = arith.addf %165, %166 : vector<1x1xf32>
    %cst_72 = arith.constant dense<0.000000e+00> : vector<32xf32>
    %168 = vector.multi_reduction <add>, %80, %cst_72 [0] : vector<16x32xf32> to vector<32xf32>
    %169 = vector.shape_cast %168 : vector<32xf32> to vector<1x32xf32>
    %c0_73 = arith.constant 0 : index
    %c0_74 = arith.constant 0 : index
    %170 = vector.load %arg12[%c0_73, %c0_74] : memref<1x32xf32, #tpu.memory_space<vmem>>, vector<1x32xf32>
    %171 = arith.mulf %169, %170 : vector<1x32xf32>
    %cst_75 = arith.constant dense<0.000000e+00> : vector<1xf32>
    %172 = vector.multi_reduction <add>, %171, %cst_75 [1] : vector<1x32xf32> to vector<1xf32>
    %173 = vector.shape_cast %172 : vector<1xf32> to vector<1x1xf32>
    %c0_76 = arith.constant 0 : index
    %c0_77 = arith.constant 0 : index
    %174 = vector.load %arg13[%c0_76, %c0_77] : memref<1x1xf32, #tpu.memory_space<vmem>>, vector<1x1xf32>
    %175 = arith.addf %173, %174 : vector<1x1xf32>
    %176 = arith.addf %167, %175 : vector<1x1xf32>
    %cst_78 = arith.constant dense<0.000000e+00> : vector<32xf32>
    %177 = vector.multi_reduction <add>, %159, %cst_78 [0] : vector<16x32xf32> to vector<32xf32>
    %178 = vector.shape_cast %177 : vector<32xf32> to vector<1x32xf32>
    %c0_79 = arith.constant 0 : index
    %c0_80 = arith.constant 0 : index
    %179 = vector.load %arg14[%c0_79, %c0_80] : memref<1x32xf32, #tpu.memory_space<vmem>>, vector<1x32xf32>
    %180 = arith.mulf %178, %179 : vector<1x32xf32>
    %cst_81 = arith.constant dense<0.000000e+00> : vector<1xf32>
    %181 = vector.multi_reduction <add>, %180, %cst_81 [1] : vector<1x32xf32> to vector<1xf32>
    %182 = vector.shape_cast %181 : vector<1xf32> to vector<1x1xf32>
    %c0_82 = arith.constant 0 : index
    %c0_83 = arith.constant 0 : index
    %183 = vector.load %arg15[%c0_82, %c0_83] : memref<1x1xf32, #tpu.memory_space<vmem>>, vector<1x1xf32>
    %184 = arith.addf %182, %183 : vector<1x1xf32>
    %185 = arith.addf %176, %184 : vector<1x1xf32>
    %c0_84 = arith.constant 0 : index
    %c0_85 = arith.constant 0 : index
    %186 = vector.load %arg16[%c0_84, %c0_85] : memref<1x1xf32, #tpu.memory_space<vmem>>, vector<1x1xf32>
    tpu.vector_store %arg16[%c0_84, %c0_85], %185 {strides = array<i32>} : memref<1x1xf32, #tpu.memory_space<vmem>>, vector<1x1xf32>,
    return
  }
}

</mosaic_0001>

<llo_original>
// kernel: tpu_custom_call.1
$region0: #{tpu_custom_call.1}
  #allocation0 [shape = 'u32[]', space=smem, size = 0x4, offset = 0x4, fixed_abs, tag = 'smem constant byte address 0x4 - core index']
  #allocation1 [shape = 'u32[144,128]{1,0:T(1,128)}', space=vmem, size = 0x12000, scoped, tag = 'internal scratch']
  #allocation2 [shape = 'f32[1,1]{1,0:T(1,128)S(1)}', space=vmem, size = 0x200, scoped, tag = 'scoped memory for tpu_custom_call.1']
  #allocation3 [shape = 'f32[1,1]{1,0:T(1,128)S(1)}', space=vmem, size = 0x200, scoped, tag = 'scoped memory for tpu_custom_call.1']
  #allocation4 [shape = 'f32[1,1]{1,0:T(1,128)S(1)}', space=vmem, size = 0x200, scoped, tag = 'scoped memory for tpu_custom_call.1']
  %s0 = inlined_call_operand.hbm [shape: bf16[16,16], index: 0, kind: input, shape index: {}]
  %s1 = inlined_call_operand.vmem [shape: f32[16,8], index: 1, kind: input, shape index: {}]
  %s2 = inlined_call_operand.hbm [shape: f32[8,32], index: 2, kind: input, shape index: {}]
  %s3 = inlined_call_operand.vmem [shape: f32[1,32], index: 3, kind: input, shape index: {}]
  %s4 = inlined_call_operand.vmem [shape: f32[32,32], index: 4, kind: input, shape index: {}]
  %s5 = inlined_call_operand.hbm [shape: f32[1,32], index: 5, kind: input, shape index: {}]
  %s6 = inlined_call_operand.hbm [shape: f32[32,32], index: 6, kind: input, shape index: {}]
  %s7 = inlined_call_operand.hbm [shape: f32[1,32], index: 7, kind: input, shape index: {}]
  %s8 = inlined_call_operand.vmem [shape: f32[32,32], index: 8, kind: input, shape index: {}]
  %s9 = inlined_call_operand.vmem [shape: f32[1,32], index: 9, kind: input, shape index: {}]
  %s10 = inlined_call_operand.vmem [shape: f32[1,8], index: 10, kind: input, shape index: {}]
  %s11 = inlined_call_operand.<no memory space> [shape: f32[1,1], index: 11, kind: input, shape index: {}]
  %s12 = inlined_call_operand.vmem [shape: f32[1,32], index: 12, kind: input, shape index: {}]
  %s13 = inlined_call_operand.<no memory space> [shape: f32[1,1], index: 13, kind: input, shape index: {}]
  %s14 = inlined_call_operand.vmem [shape: f32[1,32], index: 14, kind: input, shape index: {}]
  %s15 = inlined_call_operand.<no memory space> [shape: f32[1,1], index: 15, kind: input, shape index: {}]
  %s16 = inlined_call_operand.hbm [shape: f32[1,1], index: 16, kind: output, shape index: {}]
  %s17 = sld [smem:[#allocation0]]
  $region94: #{tpu_custom_call.1} parent=0
    _
  %s19 = ssub.s32 1, %s17
  %s20 = scalar_select 0, %s19, %s17
  %v21 = vstv %s11
  %22 = vst [vmem:[#allocation2] sm:$0x1] %v21
  %v23 = vstv %s13
  %24 = vst [vmem:[#allocation3] sm:$0x1] %v23
  %v25 = vstv %s15
  %26 = vst [vmem:[#allocation4] sm:$0x1] %v25
  $region1: #{tpu_custom_call.1} parent=0
    #allocation5 [shape = 'u8[4096]{0}', space=vmem, size = 0x1000, scoped, tag = 'input window, operand 0, single buffered']
    #allocation6 [shape = 's32[1]{0}', space=sflag, size = 0x4, scoped, tag = 'scoped memory for tpu_custom_call.1']
    #allocation7 [shape = 's32[1]{0}', space=sflag, size = 0x4, scoped, tag = 'scoped memory for tpu_custom_call.1']
    #allocation8 [shape = 'u8[4096]{0}', space=vmem, size = 0x1000, scoped, tag = 'input window, operand 2, single buffered']
    #allocation9 [shape = 's32[1]{0}', space=sflag, size = 0x4, scoped, tag = 'scoped memory for tpu_custom_call.1']
    #allocation10 [shape = 'u8[512]{0}', space=vmem, size = 0x400, scoped, tag = 'input window, operand 5, single buffered']
    #allocation11 [shape = 'u8[16384]{0}', space=vmem, size = 0x4000, scoped, tag = 'input window, operand 6, single buffered']
    #allocation12 [shape = 's32[1]{0}', space=sflag, size = 0x4, scoped, tag = 'scoped memory for tpu_custom_call.1']
    #allocation13 [shape = 'u8[512]{0}', space=vmem, size = 0x400, scoped, tag = 'input window, operand 7, single buffered']
    #allocation14 [shape = 'u8[512]{0}', space=vmem, size = 0x400, scoped, tag = 'output window, operand 0, single buffered']
    %27 = vsyncpa [#allocation6], 0
    %28 = vsyncpa [#allocation9], 0
    %29 = vsyncpa [#allocation12], 0
    %30 = vsyncpa [#allocation7], 0
    // Predicated region
    $region2: #{tpu_custom_call.1} parent=1 // pred_check
      _
    $region3: #{tpu_custom_call.1} parent=1 // pred_check_branch
      %32 = sbr.rel (0) target = $region5
    $region4: #{tpu_custom_call.1} parent=1 // pred_region
      %s34 = ssub.s32 128, 128
      %35 = vsyncadd [#allocation6], %s34
      %s36 = sshll.u32 [#allocation5], 4
      %s37 = int_to_ptr.vmem [resolvable:$true] %s36
      %42 = dma.hbm_to_vmem [thread:$0]  %s0, 128, %s37, [#allocation6], 64, 64, 4
    $region5: #{tpu_custom_call.1} parent=1 // pred_fallthru
      _
    // Predicated region
    $region6: #{tpu_custom_call.1} parent=1 // pred_check
      _
    $region7: #{tpu_custom_call.1} parent=1 // pred_check_branch
      %44 = sbr.rel (0) target = $region9
    $region8: #{tpu_custom_call.1} parent=1 // pred_region
      _
    $region9: #{tpu_custom_call.1} parent=1 // pred_fallthru
      _
    // Predicated region
    $region10: #{tpu_custom_call.1} parent=1 // pred_check
      _
    $region11: #{tpu_custom_call.1} parent=1 // pred_check_branch
      %46 = sbr.rel (0) target = $region13
    $region12: #{tpu_custom_call.1} parent=1 // pred_region
      %s48 = ssub.s32 128, 128
      %49 = vsyncadd [#allocation9], %s48
      %s51 = sshll.u32 [#allocation8], 4
      %s52 = int_to_ptr.vmem [resolvable:$true] %s51
      %54 = dma.hbm_to_vmem [thread:$0]  %s2, 128, %s52, [#allocation9]
    $region13: #{tpu_custom_call.1} parent=1 // pred_fallthru
      _
    // Predicated region
    $region14: #{tpu_custom_call.1} parent=1 // pred_check
      _
    $region15: #{tpu_custom_call.1} parent=1 // pred_check_branch
      %56 = sbr.rel (0) target = $region17
    $region16: #{tpu_custom_call.1} parent=1 // pred_region
      _
    $region17: #{tpu_custom_call.1} parent=1 // pred_fallthru
      _
    // Predicated region
    $region18: #{tpu_custom_call.1} parent=1 // pred_check
      _
    $region19: #{tpu_custom_call.1} parent=1 // pred_check_branch
      %58 = sbr.rel (0) target = $region21
    $region20: #{tpu_custom_call.1} parent=1 // pred_region
      _
    $region21: #{tpu_custom_call.1} parent=1 // pred_fallthru
      _
    // Predicated region
    $region22: #{tpu_custom_call.1} parent=1 // pred_check
      _
    $region23: #{tpu_custom_call.1} parent=1 // pred_check_branch
      %60 = sbr.rel (0) target = $region25
    $region24: #{tpu_custom_call.1} parent=1 // pred_region
      %s62 = ssub.s32 16, 16
      %63 = vsyncadd [#allocation9], %s62
      %s65 = sshll.u32 [#allocation10], 4
      %s66 = int_to_ptr.vmem [resolvable:$true] %s65
      %68 = dma.hbm_to_vmem [thread:$0]  %s5, 16, %s66, [#allocation9]
    $region25: #{tpu_custom_call.1} parent=1 // pred_fallthru
      _
    // Predicated region
    $region26: #{tpu_custom_call.1} parent=1 // pred_check
      _
    $region27: #{tpu_custom_call.1} parent=1 // pred_check_branch
      %70 = sbr.rel (0) target = $region29
    $region28: #{tpu_custom_call.1} parent=1 // pred_region
      %s72 = ssub.s32 512, 512
      %73 = vsyncadd [#allocation12], %s72
      %s74 = sshll.u32 [#allocation11], 4
      %s75 = int_to_ptr.vmem [resolvable:$true] %s74
      %80 = dma.hbm_to_vmem [thread:$0]  %s6, 512, %s75, [#allocation12], 128, 128, 8
    $region29: #{tpu_custom_call.1} parent=1 // pred_fallthru
      _
    // Predicated region
    $region30: #{tpu_custom_call.1} parent=1 // pred_check
      _
    $region31: #{tpu_custom_call.1} parent=1 // pred_check_branch
      %82 = sbr.rel (0) target = $region33
    $region32: #{tpu_custom_call.1} parent=1 // pred_region
      %s84 = ssub.s32 16, 16
      %85 = vsyncadd [#allocation12], %s84
      %s87 = sshll.u32 [#allocation13], 4
      %s88 = int_to_ptr.vmem [resolvable:$true] %s87
      %90 = dma.hbm_to_vmem [thread:$0]  %s7, 16, %s88, [#allocation12]
    $region33: #{tpu_custom_call.1} parent=1 // pred_fallthru
      _
    // Predicated region
    $region34: #{tpu_custom_call.1} parent=1 // pred_check
      _
    $region35: #{tpu_custom_call.1} parent=1 // pred_check_branch
      %92 = sbr.rel (0) target = $region37
    $region36: #{tpu_custom_call.1} parent=1 // pred_region
      _
    $region37: #{tpu_custom_call.1} parent=1 // pred_fallthru
      _
    // Predicated region
    $region38: #{tpu_custom_call.1} parent=1 // pred_check
      _
    $region39: #{tpu_custom_call.1} parent=1 // pred_check_branch
      %94 = sbr.rel (0) target = $region41
    $region40: #{tpu_custom_call.1} parent=1 // pred_region
      _
    $region41: #{tpu_custom_call.1} parent=1 // pred_fallthru
      _
    // Predicated region
    $region42: #{tpu_custom_call.1} parent=1 // pred_check
      _
    $region43: #{tpu_custom_call.1} parent=1 // pred_check_branch
      %96 = sbr.rel (0) target = $region45
    $region44: #{tpu_custom_call.1} parent=1 // pred_region
      _
    $region45: #{tpu_custom_call.1} parent=1 // pred_fallthru
      _
    // Predicated region
    $region46: #{tpu_custom_call.1} parent=1 // pred_check
      _
    $region47: #{tpu_custom_call.1} parent=1 // pred_check_branch
      %98 = sbr.rel (0) target = $region49
    $region48: #{tpu_custom_call.1} parent=1 // pred_region
      _
    $region49: #{tpu_custom_call.1} parent=1 // pred_fallthru
      _
    // Predicated region
    $region50: #{tpu_custom_call.1} parent=1 // pred_check
      _
    $region51: #{tpu_custom_call.1} parent=1 // pred_check_branch
      %100 = sbr.rel (0) target = $region53
    $region52: #{tpu_custom_call.1} parent=1 // pred_region
      _
    $region53: #{tpu_custom_call.1} parent=1 // pred_fallthru
      _
    // Predicated region
    $region54: #{tpu_custom_call.1} parent=1 // pred_check
      _
    $region55: #{tpu_custom_call.1} parent=1 // pred_check_branch
      %102 = sbr.rel (0) target = $region57
    $region56: #{tpu_custom_call.1} parent=1 // pred_region
      _
    $region57: #{tpu_custom_call.1} parent=1 // pred_fallthru
      _
    // Predicated region
    $region58: #{tpu_custom_call.1} parent=1 // pred_check
      _
    $region59: #{tpu_custom_call.1} parent=1 // pred_check_branch
      %104 = sbr.rel (0) target = $region61
    $region60: #{tpu_custom_call.1} parent=1 // pred_region
      _
    $region61: #{tpu_custom_call.1} parent=1 // pred_fallthru
      _
    // Predicated region
    $region62: #{tpu_custom_call.1} parent=1 // pred_check
      _
    $region63: #{tpu_custom_call.1} parent=1 // pred_check_branch
      %106 = sbr.rel (0) target = $region65
    $region64: #{tpu_custom_call.1} parent=1 // pred_region
      _
    $region65: #{tpu_custom_call.1} parent=1 // pred_fallthru
      _
    // Predicated region
    $region66: #{tpu_custom_call.1} parent=1 // pred_check
      _
    $region67: #{tpu_custom_call.1} parent=1 // pred_check_branch
      %108 = sbr.rel (0) target = $region69
    $region68: #{tpu_custom_call.1} parent=1 // pred_region
      %109 = dma.done [#allocation6], 128
    $region69: #{tpu_custom_call.1} parent=1 // pred_fallthru
      _
    // Predicated region
    $region70: #{tpu_custom_call.1} parent=1 // pred_check
      _
    $region71: #{tpu_custom_call.1} parent=1 // pred_check_branch
      %111 = sbr.rel (0) target = $region73
    $region72: #{tpu_custom_call.1} parent=1 // pred_region
      %112 = dma.done [#allocation9], 128
    $region73: #{tpu_custom_call.1} parent=1 // pred_fallthru
      _
    // Predicated region
    $region74: #{tpu_custom_call.1} parent=1 // pred_check
      _
    $region75: #{tpu_custom_call.1} parent=1 // pred_check_branch
      %114 = sbr.rel (0) target = $region77
    $region76: #{tpu_custom_call.1} parent=1 // pred_region
      %115 = dma.done [#allocation9], 16
    $region77: #{tpu_custom_call.1} parent=1 // pred_fallthru
      _
    // Predicated region
    $region78: #{tpu_custom_call.1} parent=1 // pred_check
      _
    $region79: #{tpu_custom_call.1} parent=1 // pred_check_branch
      %117 = sbr.rel (0) target = $region81
    $region80: #{tpu_custom_call.1} parent=1 // pred_region
      %118 = dma.done [#allocation12], 512
    $region81: #{tpu_custom_call.1} parent=1 // pred_fallthru
      _
    // Predicated region
    $region82: #{tpu_custom_call.1} parent=1 // pred_check
      _
    $region83: #{tpu_custom_call.1} parent=1 // pred_check_branch
      %120 = sbr.rel (0) target = $region85
    $region84: #{tpu_custom_call.1} parent=1 // pred_region
      %121 = dma.done [#allocation12], 16
    $region85: #{tpu_custom_call.1} parent=1 // pred_fallthru
      _
    %v123 = vld [vmem:[#allocation5] sm:$0xf]
    %v124 = vld [vmem:[#allocation5 + $0x4] sm:$0xf]
    %v125 = vld [vmem:[%s1] sm:$0xff]
    %v126 = vld [vmem:[%s1 + $0x8] sm:$0xff]
    %v127 = vpack.c.bf16 %v126, %v125
    %v130 = vunpack.c.l.b16 %v123
    %v131 = vunpack.c.l.b16 %v124
    %v132 = vpack.c.b16 %v131, %v130
    %vm133 = vcmask 130048
    %v135 = vsel %vm133, %v132, 0
    %137 = vmatprep.subr.bf16.mxu0 0
    %138 = vmatpush1.bf16.msra.mxu0 %v127
    %139 = vmatprep.subr.bf16.mxu0 0
    %140 = vmatpush1.bf16.msra.mxu0 0
    %141 = vmatprep.subr.bf16.mxu0 0
    %142 = vmatpush1.bf16.msra.mxu0 0
    %143 = vmatprep.subr.bf16.mxu0 0
    %144 = vmatpush1.bf16.msra.mxu0 0
    %145 = vmatprep.subr.bf16.mxu0 0
    %146 = vmatpush1.bf16.msra.mxu0 0
    %147 = vmatprep.subr.bf16.mxu0 0
    %148 = vmatpush1.bf16.msra.mxu0 0
    %149 = vmatprep.subr.bf16.mxu0 0
    %150 = vmatpush1.bf16.msra.mxu0 0
    %151 = vmatprep.subr.bf16.mxu0 0
    %152 = vmatpush1.bf16.msra.mxu0 0
    %153 = vmatprep.subr.bf16.mxu0 0
    %154 = vmatpush1.bf16.msra.mxu0 0
    %155 = vmatprep.subr.bf16.mxu0 0
    %156 = vmatpush1.bf16.msra.mxu0 0
    %157 = vmatprep.subr.bf16.mxu0 0
    %158 = vmatpush1.bf16.msra.mxu0 0
    %159 = vmatprep.subr.bf16.mxu0 0
    %160 = vmatpush1.bf16.msra.mxu0 0
    %161 = vmatprep.subr.bf16.mxu0 0
    %162 = vmatpush1.bf16.msra.mxu0 0
    %163 = vmatprep.subr.bf16.mxu0 0
    %164 = vmatpush1.bf16.msra.mxu0 0
    %165 = vmatprep.subr.bf16.mxu0 0
    %166 = vmatpush1.bf16.msra.mxu0 0
    %167 = vmatprep.subr.bf16.mxu0 0
    %168 = vmatpush1.bf16.msra.mxu0 0
    %169 = vmatprep.mubr.bf16.mxu0 0
    %170 = vmatmul.mubr.bf16.gmra.mrb[0].mxu0 %v135
    %v171 = vpop.f32.mrb[0].mxu0
    %v172 = vadd.f32 0.0, %v171
    %v173 = vpop.f32.mrb[0].mxu0
    %v174 = vpop.f32.mrb[0].mxu0
    %v175 = vadd.f32 0.0, %v174
    %v176 = vpop.f32.mrb[0].mxu0
    %177 = vdwg.mxu0
    %v178 = vadd.f32 %v125, %v172
    %v179 = vadd.f32 %v126, %v175
    %v180 = vld [vmem:[#allocation8] sm:$0xff]
    %v181 = vld [vmem:[%s3] sm:$0x1]
    %v183 = vlaneseq
    %v184 = vshrl.u32 %v183, 7
    %v185 = vsub.s32 0, %v184
    %v186 = vrot.slane %v181, %v185
    %vm188 = vcmask 64512
    %v190 = vsel %vm188, %v178, 0
    %v193 = vsel %vm188, %v179, 0
    %195 = vmatprep.subr.mxu0 0.0
    %196 = vmatpush1.msra.mxu0 %v180
    %197 = vmatprep.subr.mxu0 0.0
    %198 = vmatpush1.msra.mxu0 0.0
    %199 = vmatprep.subr.mxu0 0.0
    %200 = vmatpush1.msra.mxu0 0.0
    %201 = vmatprep.subr.mxu0 0.0
    %202 = vmatpush1.msra.mxu0 0.0
    %203 = vmatprep.subr.mxu0 0.0
    %204 = vmatpush1.msra.mxu0 0.0
    %205 = vmatprep.subr.mxu0 0.0
    %206 = vmatpush1.msra.mxu0 0.0
    %207 = vmatprep.subr.mxu0 0.0
    %208 = vmatpush1.msra.mxu0 0.0
    %209 = vmatprep.subr.mxu0 0.0
    %210 = vmatpush1.msra.mxu0 0.0
    %211 = vmatprep.subr.mxu0 0.0
    %212 = vmatpush1.msra.mxu0 0.0
    %213 = vmatprep.subr.mxu0 0.0
    %214 = vmatpush1.msra.mxu0 0.0
    %215 = vmatprep.subr.mxu0 0.0
    %216 = vmatpush1.msra.mxu0 0.0
    %217 = vmatprep.subr.mxu0 0.0
    %218 = vmatpush1.msra.mxu0 0.0
    %219 = vmatprep.subr.mxu0 0.0
    %220 = vmatpush1.msra.mxu0 0.0
    %221 = vmatprep.subr.mxu0 0.0
    %222 = vmatpush1.msra.mxu0 0.0
    %223 = vmatprep.subr.mxu0 0.0
    %224 = vmatpush1.msra.mxu0 0.0
    %225 = vmatprep.subr.mxu0 0.0
    %226 = vmatpush1.msra.mxu0 0.0
    %227 = vmatprep.subr.mxu0 0.0
    %228 = vmatpush1.msra.mxu0 0.0
    %229 = vmatprep.subr.mxu0 0.0
    %230 = vmatpush1.msra.mxu0 0.0
    %231 = vmatprep.subr.mxu0 0.0
    %232 = vmatpush1.msra.mxu0 0.0
    %233 = vmatprep.subr.mxu0 0.0
    %234 = vmatpush1.msra.mxu0 0.0
    %235 = vmatprep.subr.mxu0 0.0
    %236 = vmatpush1.msra.mxu0 0.0
    %237 = vmatprep.subr.mxu0 0.0
    %238 = vmatpush1.msra.mxu0 0.0
    %239 = vmatprep.subr.mxu0 0.0
    %240 = vmatpush1.msra.mxu0 0.0
    %241 = vmatprep.subr.mxu0 0.0
    %242 = vmatpush1.msra.mxu0 0.0
    %243 = vmatprep.subr.mxu0 0.0
    %244 = vmatpush1.msra.mxu0 0.0
    %245 = vmatprep.subr.mxu0 0.0
    %246 = vmatpush1.msra.mxu0 0.0
    %247 = vmatprep.subr.mxu0 0.0
    %248 = vmatpush1.msra.mxu0 0.0
    %249 = vmatprep.subr.mxu0 0.0
    %250 = vmatpush1.msra.mxu0 0.0
    %251 = vmatprep.subr.mxu0 0.0
    %252 = vmatpush1.msra.mxu0 0.0
    %253 = vmatprep.subr.mxu0 0.0
    %254 = vmatpush1.msra.mxu0 0.0
    %255 = vmatprep.subr.mxu0 0.0
    %256 = vmatpush1.msra.mxu0 0.0
    %257 = vmatprep.subr.mxu0 0.0
    %258 = vmatpush1.msra.mxu0 0.0
    %259 = vmatprep.mubr.f32.mxu0 0.0
    %260 = vmatmul.mubr.f32.gmra.mrb[0].mxu0 %v190
    %v261 = vpop.f32.mrb[0].mxu0
    %v262 = vadd.f32 %v186, %v261
    %v263 = vpop.f32.mrb[0].mxu0
    %264 = vmatprep.mubr.f32.mxu0 0.0
    %265 = vmatmul.mubr.f32.gmra.mrb[0].mxu0 %v193
    %v266 = vpop.f32.mrb[0].mxu0
    %v267 = vadd.f32 %v186, %v266
    %v268 = vpop.f32.mrb[0].mxu0
    %269 = vdwg.mxu0
    %vm270 = vcmask 261120
    %v271 = vsel %vm270, %v262, 0.0
    %v272 = vsel %vm270, %v267, 0.0
    %v273 = vadd.f32 %v271, %v272
    %v274 = vrot.slane %v273, 4
    %v275 = vadd.f32 %v273, %v274
    %v276 = vrot.slane %v275, 2
    %v277 = vadd.f32 %v275, %v276
    %v278 = vrot.slane %v277, 1
    %v279 = vadd.f32 %v277, %v278
    %v280 = vrcp.pop 16.0
    %v281 = vmul.f32 %v279, %v280
    %v282 = vmul.f32 %v262, %v262
    %v283 = vmul.f32 %v267, %v267
    %v284 = vsel %vm270, %v282, 0.0
    %v285 = vsel %vm270, %v283, 0.0
    %v286 = vadd.f32 %v284, %v285
    %v287 = vrot.slane %v286, 4
    %v288 = vadd.f32 %v286, %v287
    %v289 = vrot.slane %v288, 2
    %v290 = vadd.f32 %v288, %v289
    %v291 = vrot.slane %v290, 1
    %v292 = vadd.f32 %v290, %v291
    %v293 = vmul.f32 %v292, %v280
    %v294 = vmul.f32 %v281, %v281
    %v295 = vsub.f32 %v293, %v294
    %v296 = vmax.f32 %v295, 0.0
    %v297 = vsub.f32 %v262, %v281
    %v298 = vsub.f32 %v267, %v281
    %v299 = vadd.f32 %v296, 1e-05
    %v300 = vrsqrt.pop %v299
    %v301 = vmul.f32 %v297, %v300
    %v302 = vmul.f32 %v298, %v300
    %v303 = vmax.f32 %v301, 0.0
    %v304 = vmax.f32 %v302, 0.0
    %v305 = vld [vmem:[%s4] sm:$0xff]
    %v306 = vld [vmem:[%s4 + $0x8] sm:$0xff]
    %v307 = vld [vmem:[%s4 + $0x10] sm:$0xff]
    %v308 = vld [vmem:[%s4 + $0x18] sm:$0xff]
    %v309 = vld [vmem:[#allocation10] sm:$0x1]
    %v311 = vlaneseq
    %v312 = vshrl.u32 %v311, 7
    %v313 = vsub.s32 0, %v312
    %v314 = vrot.slane %v309, %v313
    %v317 = vsel %vm270, %v303, 0
    %v320 = vsel %vm270, %v304, 0
    %322 = vmatprep.subr.mxu0 0.0
    %323 = vmatpush1.msra.mxu0 %v305
    %324 = vmatprep.subr.mxu0 0.0
    %325 = vmatpush1.msra.mxu0 %v306
    %326 = vmatprep.subr.mxu0 0.0
    %327 = vmatpush1.msra.mxu0 %v307
    %328 = vmatprep.subr.mxu0 0.0
    %329 = vmatpush1.msra.mxu0 %v308
    %330 = vmatprep.subr.mxu0 0.0
    %331 = vmatpush1.msra.mxu0 0.0
    %332 = vmatprep.subr.mxu0 0.0
    %333 = vmatpush1.msra.mxu0 0.0
    %334 = vmatprep.subr.mxu0 0.0
    %335 = vmatpush1.msra.mxu0 0.0
    %336 = vmatprep.subr.mxu0 0.0
    %337 = vmatpush1.msra.mxu0 0.0
    %338 = vmatprep.subr.mxu0 0.0
    %339 = vmatpush1.msra.mxu0 0.0
    %340 = vmatprep.subr.mxu0 0.0
    %341 = vmatpush1.msra.mxu0 0.0
    %342 = vmatprep.subr.mxu0 0.0
    %343 = vmatpush1.msra.mxu0 0.0
    %344 = vmatprep.subr.mxu0 0.0
    %345 = vmatpush1.msra.mxu0 0.0
    %346 = vmatprep.subr.mxu0 0.0
    %347 = vmatpush1.msra.mxu0 0.0
    %348 = vmatprep.subr.mxu0 0.0
    %349 = vmatpush1.msra.mxu0 0.0
    %350 = vmatprep.subr.mxu0 0.0
    %351 = vmatpush1.msra.mxu0 0.0
    %352 = vmatprep.subr.mxu0 0.0
    %353 = vmatpush1.msra.mxu0 0.0
    %354 = vmatprep.subr.mxu0 0.0
    %355 = vmatpush1.msra.mxu0 0.0
    %356 = vmatprep.subr.mxu0 0.0
    %357 = vmatpush1.msra.mxu0 0.0
    %358 = vmatprep.subr.mxu0 0.0
    %359 = vmatpush1.msra.mxu0 0.0
    %360 = vmatprep.subr.mxu0 0.0
    %361 = vmatpush1.msra.mxu0 0.0
    %362 = vmatprep.subr.mxu0 0.0
    %363 = vmatpush1.msra.mxu0 0.0
    %364 = vmatprep.subr.mxu0 0.0
    %365 = vmatpush1.msra.mxu0 0.0
    %366 = vmatprep.subr.mxu0 0.0
    %367 = vmatpush1.msra.mxu0 0.0
    %368 = vmatprep.subr.mxu0 0.0
    %369 = vmatpush1.msra.mxu0 0.0
    %370 = vmatprep.subr.mxu0 0.0
    %371 = vmatpush1.msra.mxu0 0.0
    %372 = vmatprep.subr.mxu0 0.0
    %373 = vmatpush1.msra.mxu0 0.0
    %374 = vmatprep.subr.mxu0 0.0
    %375 = vmatpush1.msra.mxu0 0.0
    %376 = vmatprep.subr.mxu0 0.0
    %377 = vmatpush1.msra.mxu0 0.0
    %378 = vmatprep.subr.mxu0 0.0
    %379 = vmatpush1.msra.mxu0 0.0
    %380 = vmatprep.subr.mxu0 0.0
    %381 = vmatpush1.msra.mxu0 0.0
    %382 = vmatprep.subr.mxu0 0.0
    %383 = vmatpush1.msra.mxu0 0.0
    %384 = vmatprep.subr.mxu0 0.0
    %385 = vmatpush1.msra.mxu0 0.0
    %386 = vmatprep.mubr.f32.mxu0 0.0
    %387 = vmatmul.mubr.f32.gmra.mrb[0].mxu0 %v317
    %v388 = vpop.f32.mrb[0].mxu0
    %v389 = vadd.f32 %v314, %v388
    %v390 = vpop.f32.mrb[0].mxu0
    %391 = vmatprep.mubr.f32.mxu0 0.0
    %392 = vmatmul.mubr.f32.gmra.mrb[0].mxu0 %v320
    %v393 = vpop.f32.mrb[0].mxu0
    %v394 = vadd.f32 %v314, %v393
    %v395 = vpop.f32.mrb[0].mxu0
    %396 = vdwg.mxu0
    %v397 = vsel %vm270, %v389, 0.0
    %v398 = vsel %vm270, %v394, 0.0
    %v399 = vadd.f32 %v397, %v398
    %v400 = vrot.slane %v399, 4
    %v401 = vadd.f32 %v399, %v400
    %v402 = vrot.slane %v401, 2
    %v403 = vadd.f32 %v401, %v402
    %v404 = vrot.slane %v403, 1
    %v405 = vadd.f32 %v403, %v404
    %v406 = vmul.f32 %v405, %v280
    %v407 = vmul.f32 %v389, %v389
    %v408 = vmul.f32 %v394, %v394
    %v409 = vsel %vm270, %v407, 0.0
    %v410 = vsel %vm270, %v408, 0.0
    %v411 = vadd.f32 %v409, %v410
    %v412 = vrot.slane %v411, 4
    %v413 = vadd.f32 %v411, %v412
    %v414 = vrot.slane %v413, 2
    %v415 = vadd.f32 %v413, %v414
    %v416 = vrot.slane %v415, 1
    %v417 = vadd.f32 %v415, %v416
    %v418 = vmul.f32 %v417, %v280
    %v419 = vmul.f32 %v406, %v406
    %v420 = vsub.f32 %v418, %v419
    %v421 = vmax.f32 %v420, 0.0
    %v422 = vsub.f32 %v389, %v406
    %v423 = vsub.f32 %v394, %v406
    %v424 = vadd.f32 %v421, 1e-05
    %v425 = vrsqrt.pop %v424
    %v426 = vmul.f32 %v422, %v425
    %v427 = vmul.f32 %v423, %v425
    %v428 = vmax.f32 %v426, 0.0
    %v429 = vmax.f32 %v427, 0.0
    %v430 = vsel %vm270, %v428, 0.0
    %v431 = vsel %vm270, %v429, 0.0
    %v432 = vadd.f32 %v430, %v431
    %v433 = vrot.slane %v432, 4
    %v434 = vadd.f32 %v432, %v433
    %v435 = vrot.slane %v434, 2
    %v436 = vadd.f32 %v434, %v435
    %v437 = vrot.slane %v436, 1
    %v438 = vadd.f32 %v436, %v437
    %v439 = vmul.f32 %v438, %v280
    %v440 = vmul.f32 %v428, %v428
    %v441 = vmul.f32 %v429, %v429
    %v442 = vsel %vm270, %v440, 0.0
    %v443 = vsel %vm270, %v441, 0.0
    %v444 = vadd.f32 %v442, %v443
    %v445 = vrot.slane %v444, 4
    %v446 = vadd.f32 %v444, %v445
    %v447 = vrot.slane %v446, 2
    %v448 = vadd.f32 %v446, %v447
    %v449 = vrot.slane %v448, 1
    %v450 = vadd.f32 %v448, %v449
    %v451 = vmul.f32 %v450, %v280
    %v452 = vmul.f32 %v439, %v439
    %v453 = vsub.f32 %v451, %v452
    %v454 = vmax.f32 %v453, 0.0
    %v455 = vsub.f32 %v428, %v439
    %v456 = vsub.f32 %v429, %v439
    %v457 = vadd.f32 %v454, 1e-05
    %v458 = vrsqrt.pop %v457
    %v459 = vmul.f32 %v455, %v458
    %v460 = vmul.f32 %v456, %v458
    %v461 = vmax.f32 %v459, 0.0
    %v462 = vmax.f32 %v460, 0.0
    %v463 = vpack.c.bf16 %v462, %v461
    %464 = vmatprep.subr.bf16.mxu0 0
    %465 = vmatpush1.bf16.msra.mxu0 %v463
    %466 = vmatprep.subr.bf16.mxu0 0
    %467 = vmatpush1.bf16.msra.mxu0 0
    %468 = vmatprep.subr.bf16.mxu0 0
    %469 = vmatpush1.bf16.msra.mxu0 0
    %470 = vmatprep.subr.bf16.mxu0 0
    %471 = vmatpush1.bf16.msra.mxu0 0
    %472 = vmatprep.subr.bf16.mxu0 0
    %473 = vmatpush1.bf16.msra.mxu0 0
    %474 = vmatprep.subr.bf16.mxu0 0
    %475 = vmatpush1.bf16.msra.mxu0 0
    %476 = vmatprep.subr.bf16.mxu0 0
    %477 = vmatpush1.bf16.msra.mxu0 0
    %478 = vmatprep.subr.bf16.mxu0 0
    %479 = vmatpush1.bf16.msra.mxu0 0
    %480 = vmatprep.subr.bf16.mxu0 0
    %481 = vmatpush1.bf16.msra.mxu0 0
    %482 = vmatprep.subr.bf16.mxu0 0
    %483 = vmatpush1.bf16.msra.mxu0 0
    %484 = vmatprep.subr.bf16.mxu0 0
    %485 = vmatpush1.bf16.msra.mxu0 0
    %486 = vmatprep.subr.bf16.mxu0 0
    %487 = vmatpush1.bf16.msra.mxu0 0
    %488 = vmatprep.subr.bf16.mxu0 0
    %489 = vmatpush1.bf16.msra.mxu0 0
    %490 = vmatprep.subr.bf16.mxu0 0
    %491 = vmatpush1.bf16.msra.mxu0 0
    %492 = vmatprep.subr.bf16.mxu0 0
    %493 = vmatpush1.bf16.msra.mxu0 0
    %494 = vmatprep.subr.bf16.mxu0 0
    %495 = vmatpush1.bf16.msra.mxu0 0
    %496 = vmatprep.mubr.bf16.mxu0 0
    %497 = vmatmul.mubr.bf16.gmra.mrb[0].mxu0 %v135
    %v498 = vpop.f32.mrb[0].mxu0
    %v499 = vadd.f32 0.0, %v498
    %v500 = vpop.f32.mrb[0].mxu0
    %v501 = vpop.f32.mrb[0].mxu0
    %v502 = vadd.f32 0.0, %v501
    %v503 = vpop.f32.mrb[0].mxu0
    %504 = vdwg.mxu0
    %v505 = vadd.f32 %v461, %v499
    %v506 = vadd.f32 %v462, %v502
    %v507 = vld [vmem:[#allocation11] sm:$0xff]
    %v508 = vld [vmem:[#allocation11 + $0x8] sm:$0xff]
    %v509 = vld [vmem:[#allocation11 + $0x10] sm:$0xff]
    %v510 = vld [vmem:[#allocation11 + $0x18] sm:$0xff]
    %v511 = vld [vmem:[#allocation13] sm:$0x1]
    %v513 = vlaneseq
    %v514 = vshrl.u32 %v513, 7
    %v515 = vsub.s32 0, %v514
    %v516 = vrot.slane %v511, %v515
    %v519 = vsel %vm270, %v505, 0
    %v522 = vsel %vm270, %v506, 0
    %524 = vmatprep.subr.mxu0 0.0
    %525 = vmatpush1.msra.mxu0 %v507
    %526 = vmatprep.subr.mxu0 0.0
    %527 = vmatpush1.msra.mxu0 %v508
    %528 = vmatprep.subr.mxu0 0.0
    %529 = vmatpush1.msra.mxu0 %v509
    %530 = vmatprep.subr.mxu0 0.0
    %531 = vmatpush1.msra.mxu0 %v510
    %532 = vmatprep.subr.mxu0 0.0
    %533 = vmatpush1.msra.mxu0 0.0
    %534 = vmatprep.subr.mxu0 0.0
    %535 = vmatpush1.msra.mxu0 0.0
    %536 = vmatprep.subr.mxu0 0.0
    %537 = vmatpush1.msra.mxu0 0.0
    %538 = vmatprep.subr.mxu0 0.0
    %539 = vmatpush1.msra.mxu0 0.0
    %540 = vmatprep.subr.mxu0 0.0
    %541 = vmatpush1.msra.mxu0 0.0
    %542 = vmatprep.subr.mxu0 0.0
    %543 = vmatpush1.msra.mxu0 0.0
    %544 = vmatprep.subr.mxu0 0.0
    %545 = vmatpush1.msra.mxu0 0.0
    %546 = vmatprep.subr.mxu0 0.0
    %547 = vmatpush1.msra.mxu0 0.0
    %548 = vmatprep.subr.mxu0 0.0
    %549 = vmatpush1.msra.mxu0 0.0
    %550 = vmatprep.subr.mxu0 0.0
    %551 = vmatpush1.msra.mxu0 0.0
    %552 = vmatprep.subr.mxu0 0.0
    %553 = vmatpush1.msra.mxu0 0.0
    %554 = vmatprep.subr.mxu0 0.0
    %555 = vmatpush1.msra.mxu0 0.0
    %556 = vmatprep.subr.mxu0 0.0
    %557 = vmatpush1.msra.mxu0 0.0
    %558 = vmatprep.subr.mxu0 0.0
    %559 = vmatpush1.msra.mxu0 0.0
    %560 = vmatprep.subr.mxu0 0.0
    %561 = vmatpush1.msra.mxu0 0.0
    %562 = vmatprep.subr.mxu0 0.0
    %563 = vmatpush1.msra.mxu0 0.0
    %564 = vmatprep.subr.mxu0 0.0
    %565 = vmatpush1.msra.mxu0 0.0
    %566 = vmatprep.subr.mxu0 0.0
    %567 = vmatpush1.msra.mxu0 0.0
    %568 = vmatprep.subr.mxu0 0.0
    %569 = vmatpush1.msra.mxu0 0.0
    %570 = vmatprep.subr.mxu0 0.0
    %571 = vmatpush1.msra.mxu0 0.0
    %572 = vmatprep.subr.mxu0 0.0
    %573 = vmatpush1.msra.mxu0 0.0
    %574 = vmatprep.subr.mxu0 0.0
    %575 = vmatpush1.msra.mxu0 0.0
    %576 = vmatprep.subr.mxu0 0.0
    %577 = vmatpush1.msra.mxu0 0.0
    %578 = vmatprep.subr.mxu0 0.0
    %579 = vmatpush1.msra.mxu0 0.0
    %580 = vmatprep.subr.mxu0 0.0
    %581 = vmatpush1.msra.mxu0 0.0
    %582 = vmatprep.subr.mxu0 0.0
    %583 = vmatpush1.msra.mxu0 0.0
    %584 = vmatprep.subr.mxu0 0.0
    %585 = vmatpush1.msra.mxu0 0.0
    %586 = vmatprep.subr.mxu0 0.0
    %587 = vmatpush1.msra.mxu0 0.0
    %588 = vmatprep.mubr.f32.mxu0 0.0
    %589 = vmatmul.mubr.f32.gmra.mrb[0].mxu0 %v519
    %v590 = vpop.f32.mrb[0].mxu0
    %v591 = vadd.f32 %v516, %v590
    %v592 = vpop.f32.mrb[0].mxu0
    %593 = vmatprep.mubr.f32.mxu0 0.0
    %594 = vmatmul.mubr.f32.gmra.mrb[0].mxu0 %v522
    %v595 = vpop.f32.mrb[0].mxu0
    %v596 = vadd.f32 %v516, %v595
    %v597 = vpop.f32.mrb[0].mxu0
    %598 = vdwg.mxu0
    %v599 = vsel %vm270, %v591, 0.0
    %v600 = vsel %vm270, %v596, 0.0
    %v601 = vadd.f32 %v599, %v600
    %v602 = vrot.slane %v601, 4
    %v603 = vadd.f32 %v601, %v602
    %v604 = vrot.slane %v603, 2
    %v605 = vadd.f32 %v603, %v604
    %v606 = vrot.slane %v605, 1
    %v607 = vadd.f32 %v605, %v606
    %v608 = vmul.f32 %v607, %v280
    %v609 = vmul.f32 %v591, %v591
    %v610 = vmul.f32 %v596, %v596
    %v611 = vsel %vm270, %v609, 0.0
    %v612 = vsel %vm270, %v610, 0.0
    %v613 = vadd.f32 %v611, %v612
    %v614 = vrot.slane %v613, 4
    %v615 = vadd.f32 %v613, %v614
    %v616 = vrot.slane %v615, 2
    %v617 = vadd.f32 %v615, %v616
    %v618 = vrot.slane %v617, 1
    %v619 = vadd.f32 %v617, %v618
    %v620 = vmul.f32 %v619, %v280
    %v621 = vmul.f32 %v608, %v608
    %v622 = vsub.f32 %v620, %v621
    %v623 = vmax.f32 %v622, 0.0
    %v624 = vsub.f32 %v591, %v608
    %v625 = vsub.f32 %v596, %v608
    %v626 = vadd.f32 %v623, 1e-05
    %v627 = vrsqrt.pop %v626
    %v628 = vmul.f32 %v624, %v627
    %v629 = vmul.f32 %v625, %v627
    %v630 = vmax.f32 %v628, 0.0
    %v631 = vmax.f32 %v629, 0.0
    %v632 = vld [vmem:[%s8] sm:$0xff]
    %v633 = vld [vmem:[%s8 + $0x8] sm:$0xff]
    %v634 = vld [vmem:[%s8 + $0x10] sm:$0xff]
    %v635 = vld [vmem:[%s8 + $0x18] sm:$0xff]
    %v636 = vld [vmem:[%s9] sm:$0x1]
    %v638 = vlaneseq
    %v639 = vshrl.u32 %v638, 7
    %v640 = vsub.s32 0, %v639
    %v641 = vrot.slane %v636, %v640
    %v644 = vsel %vm270, %v630, 0
    %v647 = vsel %vm270, %v631, 0
    %649 = vmatprep.subr.mxu0 0.0
    %650 = vmatpush1.msra.mxu0 %v632
    %651 = vmatprep.subr.mxu0 0.0
    %652 = vmatpush1.msra.mxu0 %v633
    %653 = vmatprep.subr.mxu0 0.0
    %654 = vmatpush1.msra.mxu0 %v634
    %655 = vmatprep.subr.mxu0 0.0
    %656 = vmatpush1.msra.mxu0 %v635
    %657 = vmatprep.subr.mxu0 0.0
    %658 = vmatpush1.msra.mxu0 0.0
    %659 = vmatprep.subr.mxu0 0.0
    %660 = vmatpush1.msra.mxu0 0.0
    %661 = vmatprep.subr.mxu0 0.0
    %662 = vmatpush1.msra.mxu0 0.0
    %663 = vmatprep.subr.mxu0 0.0
    %664 = vmatpush1.msra.mxu0 0.0
    %665 = vmatprep.subr.mxu0 0.0
    %666 = vmatpush1.msra.mxu0 0.0
    %667 = vmatprep.subr.mxu0 0.0
    %668 = vmatpush1.msra.mxu0 0.0
    %669 = vmatprep.subr.mxu0 0.0
    %670 = vmatpush1.msra.mxu0 0.0
    %671 = vmatprep.subr.mxu0 0.0
    %672 = vmatpush1.msra.mxu0 0.0
    %673 = vmatprep.subr.mxu0 0.0
    %674 = vmatpush1.msra.mxu0 0.0
    %675 = vmatprep.subr.mxu0 0.0
    %676 = vmatpush1.msra.mxu0 0.0
    %677 = vmatprep.subr.mxu0 0.0
    %678 = vmatpush1.msra.mxu0 0.0
    %679 = vmatprep.subr.mxu0 0.0
    %680 = vmatpush1.msra.mxu0 0.0
    %681 = vmatprep.subr.mxu0 0.0
    %682 = vmatpush1.msra.mxu0 0.0
    %683 = vmatprep.subr.mxu0 0.0
    %684 = vmatpush1.msra.mxu0 0.0
    %685 = vmatprep.subr.mxu0 0.0
    %686 = vmatpush1.msra.mxu0 0.0
    %687 = vmatprep.subr.mxu0 0.0
    %688 = vmatpush1.msra.mxu0 0.0
    %689 = vmatprep.subr.mxu0 0.0
    %690 = vmatpush1.msra.mxu0 0.0
    %691 = vmatprep.subr.mxu0 0.0
    %692 = vmatpush1.msra.mxu0 0.0
    %693 = vmatprep.subr.mxu0 0.0
    %694 = vmatpush1.msra.mxu0 0.0
    %695 = vmatprep.subr.mxu0 0.0
    %696 = vmatpush1.msra.mxu0 0.0
    %697 = vmatprep.subr.mxu0 0.0
    %698 = vmatpush1.msra.mxu0 0.0
    %699 = vmatprep.subr.mxu0 0.0
    %700 = vmatpush1.msra.mxu0 0.0
    %701 = vmatprep.subr.mxu0 0.0
    %702 = vmatpush1.msra.mxu0 0.0
    %703 = vmatprep.subr.mxu0 0.0
    %704 = vmatpush1.msra.mxu0 0.0
    %705 = vmatprep.subr.mxu0 0.0
    %706 = vmatpush1.msra.mxu0 0.0
    %707 = vmatprep.subr.mxu0 0.0
    %708 = vmatpush1.msra.mxu0 0.0
    %709 = vmatprep.subr.mxu0 0.0
    %710 = vmatpush1.msra.mxu0 0.0
    %711 = vmatprep.subr.mxu0 0.0
    %712 = vmatpush1.msra.mxu0 0.0
    %713 = vmatprep.mubr.f32.mxu0 0.0
    %714 = vmatmul.mubr.f32.gmra.mrb[0].mxu0 %v644
    %v715 = vpop.f32.mrb[0].mxu0
    %v716 = vadd.f32 %v641, %v715
    %v717 = vpop.f32.mrb[0].mxu0
    %718 = vmatprep.mubr.f32.mxu0 0.0
    %719 = vmatmul.mubr.f32.gmra.mrb[0].mxu0 %v647
    %v720 = vpop.f32.mrb[0].mxu0
    %v721 = vadd.f32 %v641, %v720
    %v722 = vpop.f32.mrb[0].mxu0
    %723 = vdwg.mxu0
    %v724 = vsel %vm270, %v716, 0.0
    %v725 = vsel %vm270, %v721, 0.0
    %v726 = vadd.f32 %v724, %v725
    %v727 = vrot.slane %v726, 4
    %v728 = vadd.f32 %v726, %v727
    %v729 = vrot.slane %v728, 2
    %v730 = vadd.f32 %v728, %v729
    %v731 = vrot.slane %v730, 1
    %v732 = vadd.f32 %v730, %v731
    %v733 = vmul.f32 %v732, %v280
    %v734 = vmul.f32 %v716, %v716
    %v735 = vmul.f32 %v721, %v721
    %v736 = vsel %vm270, %v734, 0.0
    %v737 = vsel %vm270, %v735, 0.0
    %v738 = vadd.f32 %v736, %v737
    %v739 = vrot.slane %v738, 4
    %v740 = vadd.f32 %v738, %v739
    %v741 = vrot.slane %v740, 2
    %v742 = vadd.f32 %v740, %v741
    %v743 = vrot.slane %v742, 1
    %v744 = vadd.f32 %v742, %v743
    %v745 = vmul.f32 %v744, %v280
    %v746 = vmul.f32 %v733, %v733
    %v747 = vsub.f32 %v745, %v746
    %v748 = vmax.f32 %v747, 0.0
    %v749 = vsub.f32 %v716, %v733
    %v750 = vsub.f32 %v721, %v733
    %v751 = vadd.f32 %v748, 1e-05
    %v752 = vrsqrt.pop %v751
    %v753 = vmul.f32 %v749, %v752
    %v754 = vmul.f32 %v750, %v752
    %v755 = vmax.f32 %v753, 0.0
    %v756 = vmax.f32 %v754, 0.0
    %v757 = vsel %vm270, %v755, 0.0
    %v758 = vsel %vm270, %v756, 0.0
    %v759 = vadd.f32 %v757, %v758
    %v760 = vrot.slane %v759, 4
    %v761 = vadd.f32 %v759, %v760
    %v762 = vrot.slane %v761, 2
    %v763 = vadd.f32 %v761, %v762
    %v764 = vrot.slane %v763, 1
    %v765 = vadd.f32 %v763, %v764
    %v766 = vmul.f32 %v765, %v280
    %v767 = vmul.f32 %v755, %v755
    %v768 = vmul.f32 %v756, %v756
    %v769 = vsel %vm270, %v767, 0.0
    %v770 = vsel %vm270, %v768, 0.0
    %v771 = vadd.f32 %v769, %v770
    %v772 = vrot.slane %v771, 4
    %v773 = vadd.f32 %v771, %v772
    %v774 = vrot.slane %v773, 2
    %v775 = vadd.f32 %v773, %v774
    %v776 = vrot.slane %v775, 1
    %v777 = vadd.f32 %v775, %v776
    %v778 = vmul.f32 %v777, %v280
    %v779 = vmul.f32 %v766, %v766
    %v780 = vsub.f32 %v778, %v779
    %v781 = vmax.f32 %v780, 0.0
    %v782 = vsub.f32 %v755, %v766
    %v783 = vsub.f32 %v756, %v766
    %v784 = vadd.f32 %v781, 1e-05
    %v785 = vrsqrt.pop %v784
    %v786 = vmul.f32 %v782, %v785
    %v787 = vmul.f32 %v783, %v785
    %v788 = vmax.f32 %v786, 0.0
    %v789 = vmax.f32 %v787, 0.0
    %v790 = vsel %vm188, %v125, 0.0
    %v791 = vsel %vm188, %v126, 0.0
    %v792 = vadd.f32 %v790, %v791
    %v793 = vrot.slane %v792, 4
    %v794 = vadd.f32 %v792, %v793
    %v795 = vrot.slane %v794, 2
    %v796 = vadd.f32 %v794, %v795
    %v797 = vrot.slane %v796, 1
    %v798 = vadd.f32 %v796, %v797
    %v799 = vld [vmem:[%s10] sm:$0x1]
    %v800 = vmul.f32 %v798, %v799
    %vm801 = vcmask 57344
    %v802 = vsel %vm801, %v800, 0.0
    %803 = vadd.xlane.f32.xlu0 %v802
    %v804 = vpop.xlane.xlu0 %803
    %v805 = vld [vmem:[#allocation2] sm:$0x1]
    %v806 = vadd.f32 %v804, %v805
    %v807 = vsel %vm270, %v461, 0.0
    %v808 = vsel %vm270, %v462, 0.0
    %v809 = vadd.f32 %v807, %v808
    %v810 = vrot.slane %v809, 4
    %v811 = vadd.f32 %v809, %v810
    %v812 = vrot.slane %v811, 2
    %v813 = vadd.f32 %v811, %v812
    %v814 = vrot.slane %v813, 1
    %v815 = vadd.f32 %v813, %v814
    %v816 = vld [vmem:[%s12] sm:$0x1]
    %v817 = vmul.f32 %v815, %v816
    %vm818 = vcmask 253952
    %v819 = vsel %vm818, %v817, 0.0
    %820 = vadd.xlane.f32.xlu0 %v819
    %v821 = vpop.xlane.xlu0 %820
    %v822 = vld [vmem:[#allocation3] sm:$0x1]
    %v823 = vadd.f32 %v821, %v822
    %v824 = vadd.f32 %v806, %v823
    %v825 = vsel %vm270, %v788, 0.0
    %v826 = vsel %vm270, %v789, 0.0
    %v827 = vadd.f32 %v825, %v826
    %v828 = vrot.slane %v827, 4
    %v829 = vadd.f32 %v827, %v828
    %v830 = vrot.slane %v829, 2
    %v831 = vadd.f32 %v829, %v830
    %v832 = vrot.slane %v831, 1
    %v833 = vadd.f32 %v831, %v832
    %v834 = vld [vmem:[%s14] sm:$0x1]
    %v835 = vmul.f32 %v833, %v834
    %v836 = vsel %vm818, %v835, 0.0
    %837 = vadd.xlane.f32.xlu0 %v836
    %v838 = vpop.xlane.xlu0 %837
    %v839 = vld [vmem:[#allocation4] sm:$0x1]
    %v840 = vadd.f32 %v838, %v839
    %v841 = vadd.f32 %v824, %v840
    %vm842 = vcmask 0
    %843 = vst.msk [vmem:[#allocation14] sm:$0x1] %vm842, %v841
    // Predicated region
    $region86: #{tpu_custom_call.1} parent=1 // pred_check
      _
    $region87: #{tpu_custom_call.1} parent=1 // pred_check_branch
      %845 = sbr.rel (0) target = $region89
    $region88: #{tpu_custom_call.1} parent=1 // pred_region
      %s847 = ssub.s32 16, 16
      %848 = vsyncadd [#allocation7], %s847
      %s850 = sshll.u32 [#allocation14], 4
      %s851 = int_to_ptr.vmem [resolvable:$true] %s850
      %853 = dma.vmem_to_hbm [thread:$0]  %s851, 16, %s16, [#allocation7]
    $region89: #{tpu_custom_call.1} parent=1 // pred_fallthru
      _
    // Predicated region
    $region90: #{tpu_custom_call.1} parent=1 // pred_check
      _
    $region91: #{tpu_custom_call.1} parent=1 // pred_check_branch
      %855 = sbr.rel (0) target = $region93
    $region92: #{tpu_custom_call.1} parent=1 // pred_region
      %856 = dma.done [#allocation7], 16
    $region93: #{tpu_custom_call.1} parent=1 // pred_fallthru
      _
    %857 = vsyncpa [#allocation6], 1
    %858 = vsyncpa [#allocation9], 1
    %859 = vsyncpa [#allocation12], 1
    %860 = vsyncpa [#allocation7], 1

</llo_original>
